<compile_context>
chip_gen: v6e
topology: v6e:2x2x1
jax: 0.10.0
libtpu: 0.0.40
codegen_flags: <defaults>
</compile_context>

<pallas_src>
import numpy as np
import jax
import jax.numpy as jnp
from jax.experimental import pallas as pl
from jax.experimental.pallas import tpu as pltpu

KERNEL_SIZE = 25  # series_decomp(25)


def _build_avg_matrix(seq_len, kernel_size=KERNEL_SIZE):
    """[L, L] matrix A such that trend = A @ x (moving average, k=25, stride 1,
    replicated-edge padding), so the decomposition can be folded into weights."""
    L, K = seq_len, kernel_size
    pad_front = K - 1 - (K - 1) // 2   # 12
    A = np.zeros((L, L), dtype=np.float32)
    for t in range(L):
        for k in range(K):
            src = min(max(t + k - pad_front, 0), L - 1)
            A[t, src] += 1.0 / K
    return jnp.asarray(A)


def fold_params(params, seq_len, pred_len, channels, n_marks):
    """Host-side algebraic folding (one-time; amortized across calls)."""
    L, P, C, M = seq_len, pred_len, channels, n_marks
    A = _build_avg_matrix(L)                                        # [L, L]

    # seasonal+trend heads -> one combined head
    w_seas, w_trend = params['w_seas'], params['w_trend']           # [L, P]
    w_comb = w_seas + A.T @ (w_trend - w_seas)                      # [L, P]
    b_comb = params['b_seas'][:, 0] + params['b_trend'][:, 0]       # [P]

    # ScalerParams folded into the timestamp head
    scaler = params['scaler'][0]                                    # [M]
    w_ts = params['w_ts']                                           # [L, L] (in,out)
    w_ts_full = (w_ts[:, None, :] * scaler[None, :, None]).reshape(L * M, L)
    b_ts_row = (params['b_ts'][:, 0] * jnp.sum(scaler)).reshape(1, L)

    # mean over pred_len folded into the result head
    w_res_mean = jnp.mean(params['w_res'], axis=1)                  # [L]

    return {
        'w_ts_full': w_ts_full,                                       # [L*M, L]
        'b_ts_row': b_ts_row,                                         # [1, L]
        'w_comb_t': w_comb.T,                                         # [P, L]
        'b_comb_plane': jnp.asarray(
            jnp.broadcast_to(b_comb[:, None], (P, C))),               # [P, C]
        'w_res_plane': jnp.asarray(
            jnp.broadcast_to(w_res_mean[:, None], (L, C))),           # [L, C]
        'b_res_mean': jnp.mean(params['b_res']).reshape(1, 1),        # SMEM scalar
        'sel_dist': params['sel_dist'],                               # (1,1) SMEM
        'sel_scale': params['sel_scale'],                             # (1,1) SMEM
    }


def _dlinear_ts_kernel(x_ref, mark_ref,
                       w_ts_ref, b_ts_ref,
                       w_comb_ref, b_comb_ref,
                       w_res_ref,
                       dist_ref, scale_ref, bres_ref,
                       out_ref):
    B, L, C = x_ref.shape

    x = x_ref[...]                                            # [B, L, C]
    seq_last = x[:, L - 1:L, :]                               # [B, 1, C]
    xn = x - seq_last

    # Selector threshold uses the mean over the WHOLE batch (torch semantics).
    cond = jnp.mean(xn) + dist_ref[0, 0]
    x_sel = jnp.where(jnp.abs(xn) > cond,
                      scale_ref[0, 0], jnp.float32(0.0)) * xn  # [B, L, C]

    # --- timestamp head (ScalerParams folded into weight): one batched matmul ---
    ts = jnp.dot(mark_ref[...], w_ts_ref[...],
                 preferred_element_type=jnp.float32) + b_ts_ref[...]   # [B, L]

    # --- result head with mean-over-P folded: mul + sublane reduce ---
    r = jnp.sum(x_sel * w_res_ref[...], axis=1)                # [B, C]
    y0 = ts * r + bres_ref[0, 0]                               # [B, C] (C == L)

    # --- fused seasonal+trend head (moving average folded): [P,L]@[L,C] per row ---
    w_comb = w_comb_ref[...]                                   # [P, L]
    b_comb = b_comb_ref[...]                                   # [P, C]
    for b in range(B):                                         # static unroll, tiny B
        forecast = jnp.dot(w_comb, x_sel[b],
                           preferred_element_type=jnp.float32) + b_comb   # [P, C]
        out_ref[b] = y0[b:b + 1, :] * forecast + seq_last[b]   # [P, C]


def dlinear_forward(x, batch_x_mark, dec_inp, batch_y_mark, folded):
    """Pallas implementation of Model.forward. dec_inp / batch_y_mark are unused,
    mirroring the PyTorch forward."""
    del dec_inp, batch_y_mark
    B, L, C = x.shape
    M = batch_x_mark.shape[2]
    P = folded['w_comb_t'].shape[0]
    # Inherited from the PyTorch model: the x_sel.permute(0,2,1)*timestamps
    # broadcast requires channels == seq_len.
    assert C == L, "Model requires enc_in == seq_len"

    # lane-denser marks: [B, L*M]
    mark_flat = batch_x_mark.reshape(B, L * M)

    def vmem(shape):
        n = len(shape)
        return pl.BlockSpec(shape, lambda i, _n=n: (0,) * _n)

    smem = pl.BlockSpec(memory_space=pltpu.MemorySpace.SMEM)

    out = pl.pallas_call(
        _dlinear_ts_kernel,
        out_shape=jax.ShapeDtypeStruct((B, P, C), jnp.float32),
        grid=(1,),
        in_specs=[
            vmem((B, L, C)),          # x (whole tiny batch)
            vmem((B, L * M)),         # flattened marks
            vmem((L * M, L)),         # folded timestamp weight
            vmem((1, L)),             # folded timestamp bias
            vmem((P, L)),             # combined seasonal+trend W^T
            vmem((P, C)),             # combined bias plane
            vmem((L, C)),             # folded result-head plane
            smem, smem, smem,         # SelectorDistance/Scaler, mean(b_res)
        ],
        out_specs=vmem((B, P, C)),
        compiler_params=pltpu.CompilerParams(
            dimension_semantics=("arbitrary",)),
    )(x, mark_flat,
      folded['w_ts_full'], folded['b_ts_row'],
      folded['w_comb_t'], folded['b_comb_plane'],
      folded['w_res_plane'],
      folded['sel_dist'], folded['sel_scale'], folded['b_res_mean'])
    return out


def reference_forward(x, mark, params):
    """Pure-JAX transcription of the PyTorch forward (for verification),
    using the ORIGINAL (unfolded) parameters."""
    K = KERNEL_SIZE
    B, L, C = x.shape
    seq_last = x[:, -1:, :]
    xn = x - seq_last
    cond = jnp.mean(xn) + params['sel_dist'][0, 0]
    selector = jnp.where(jnp.abs(xn) > cond, params['sel_scale'][0, 0],
                         jnp.float32(0.0))
    xs = selector * xn
    ts = jnp.swapaxes(mark, 1, 2) @ params['w_ts'] + params['b_ts'][:, 0]
    ts = jnp.swapaxes(ts, 1, 2)
    ts = jnp.sum(ts * params['scaler'][0][None, None, :], axis=2, keepdims=True)
    pad_f = K - 1 - (K - 1) // 2
    pad_e = (K - 1) // 2
    front = jnp.repeat(xs[:, :1, :], pad_f, axis=1)
    end = jnp.repeat(xs[:, -1:, :], pad_e, axis=1)
    padded = jnp.concatenate([front, xs, end], axis=1)
    mov = sum(padded[:, k:k + L, :] for k in range(K)) / K
    trend, seasonal = mov, xs - mov
    so = jnp.swapaxes(jnp.swapaxes(seasonal, 1, 2) @ params['w_seas']
                      + params['b_seas'][:, 0], 1, 2)
    to = jnp.swapaxes(jnp.swapaxes(trend, 1, 2) @ params['w_trend']
                      + params['b_trend'][:, 0], 1, 2)
    forecast = so + to
    prod = jnp.swapaxes(xs, 1, 2) * ts
    yr = prod @ params['w_res'] + params['b_res'][0]
    y = jnp.mean(jnp.swapaxes(yr, 1, 2), axis=1, keepdims=True)
    return y * forecast + seq_last


if __name__ == "__main__":
    # configs: seq_len=16, pred_len=8, enc_in=16 (enc_in must equal seq_len for
    # the broadcast in the original PyTorch code), 4 time marks.
    B, L, P, C, M = 2, 16, 8, 16, 4

    key = jax.random.PRNGKey(0)
    ks = jax.random.split(key, 16)
    f32 = jnp.float32
    params = {
        'w_ts':    0.1 * jax.random.normal(ks[0], (L, L), f32),
        'b_ts':    0.1 * jax.random.normal(ks[1], (L, 1), f32),
        'w_seas':  0.1 * jax.random.normal(ks[2], (L, P), f32),
        'b_seas':  0.1 * jax.random.normal(ks[3], (P, 1), f32),
        'w_trend': 0.1 * jax.random.normal(ks[4], (L, P), f32),
        'b_trend': 0.1 * jax.random.normal(ks[5], (P, 1), f32),
        'w_res':   0.1 * jax.random.normal(ks[6], (L, P), f32),
        'b_res':   0.1 * jax.random.normal(ks[7], (1, P), f32),
        'scaler':  jax.random.normal(ks[8], (1, M), f32),       # ScalerParams ~ randn(4)
        'sel_dist':  jnp.full((1, 1), 0.1, f32),                 # SelectorDistance
        'sel_scale': jnp.full((1, 1), 0.25, f32),                # SelectorScaler
    }

    x = jax.random.normal(ks[9], (B, L, C), f32)
    batch_x_mark = jax.random.normal(ks[10], (B, L, M), f32)
    dec_inp = jnp.zeros((B, P, C), f32)        # unused (as in PyTorch forward)
    batch_y_mark = jnp.zeros((B, P, M), f32)   # unused (as in PyTorch forward)

    folded = fold_params(params, L, P, C, M)   # one-time host-side weight folding

    out = dlinear_forward(x, batch_x_mark, dec_inp, batch_y_mark, folded)
    out = jax.block_until_ready(out)

    ref = reference_forward(x, batch_x_mark, params)
    assert out.shape == (B, P, C), out.shape
    assert jnp.allclose(out, ref, rtol=1e-3, atol=1e-3), \
        float(jnp.max(jnp.abs(out - ref)))
    print("KERNEL_OK")
</pallas_src>

<mosaic_0001>
module attributes {stable_mosaic.version = 11 : i64} {
  func.func @_dlinear_ts_kernel(%arg0: i32, %arg1: memref<2x16x16xf32, #tpu.memory_space<vmem>>, %arg2: memref<2x64xf32, #tpu.memory_space<vmem>>, %arg3: memref<64x16xf32, #tpu.memory_space<vmem>>, %arg4: memref<1x16xf32, #tpu.memory_space<vmem>>, %arg5: memref<8x16xf32, #tpu.memory_space<vmem>>, %arg6: memref<8x16xf32, #tpu.memory_space<vmem>>, %arg7: memref<16x16xf32, #tpu.memory_space<vmem>>, %arg8: memref<1x1xf32, #tpu.memory_space<smem>>, %arg9: memref<1x1xf32, #tpu.memory_space<smem>>, %arg10: memref<1x1xf32, #tpu.memory_space<smem>>, %arg11: memref<2x8x16xf32, #tpu.memory_space<vmem>>) attributes {dimension_semantics = [#tpu.dimension_semantics<arbitrary>], iteration_bounds = array<i64: 1>, scalar_prefetch = 0 : i64, scratch_operands = 0 : i64, tpu.core_type = #tpu.core_type<tc>, window_params = [{pipeline_mode = #tpu.pipeline_mode<synchronous>, transform_indices = @transform_0, window_bounds = array<i64: 2, 16, 16>}, {pipeline_mode = #tpu.pipeline_mode<synchronous>, transform_indices = @transform_1, window_bounds = array<i64: 2, 64>}, {pipeline_mode = #tpu.pipeline_mode<synchronous>, transform_indices = @transform_2, window_bounds = array<i64: 64, 16>}, {pipeline_mode = #tpu.pipeline_mode<synchronous>, transform_indices = @transform_3, window_bounds = array<i64: 1, 16>}, {pipeline_mode = #tpu.pipeline_mode<synchronous>, transform_indices = @transform_4, window_bounds = array<i64: 8, 16>}, {pipeline_mode = #tpu.pipeline_mode<synchronous>, transform_indices = @transform_5, window_bounds = array<i64: 8, 16>}, {pipeline_mode = #tpu.pipeline_mode<synchronous>, transform_indices = @transform_6, window_bounds = array<i64: 16, 16>}, {transform_indices = @transform_7, window_bounds = array<i64: 1, 1>}, {transform_indices = @transform_8, window_bounds = array<i64: 1, 1>}, {transform_indices = @transform_9, window_bounds = array<i64: 1, 1>}, {pipeline_mode = #tpu.pipeline_mode<synchronous>, transform_indices = @transform_10, window_bounds = array<i64: 2, 8, 16>}]} {
    %c0 = arith.constant 0 : index
    %c0_0 = arith.constant 0 : index
    %c0_1 = arith.constant 0 : index
    %0 = vector.load %arg1[%c0, %c0_0, %c0_1] : memref<2x16x16xf32, #tpu.memory_space<vmem>>, vector<2x16x16xf32>
    %1 = vector.extract_strided_slice %0 {offsets = [0, 15, 0], sizes = [2, 1, 16], strides = [1, 1, 1]} : vector<2x16x16xf32> to vector<2x1x16xf32>
    %2 = vector.broadcast %1 : vector<2x1x16xf32> to vector<2x16x16xf32>
    %3 = arith.subf %0, %2 : vector<2x16x16xf32>
    %4 = vector.shape_cast %3 : vector<2x16x16xf32> to vector<1x2x16x16xf32>
    %cst = arith.constant dense<0.000000e+00> : vector<1xf32>
    %5 = vector.multi_reduction <add>, %4, %cst [1, 2, 3] : vector<1x2x16x16xf32> to vector<1xf32>
    %6 = vector.shape_cast %5 : vector<1xf32> to vector<1x1x1x1xf32>
    %7 = vector.extract %6[0, 0, 0, 0] : f32 from vector<1x1x1x1xf32>
    %cst_2 = arith.constant 5.120000e+02 : f32
    %8 = arith.divf %7, %cst_2 : f32
    %c0_3 = arith.constant 0 : index
    %c0_4 = arith.constant 0 : index
    %9 = memref.load %arg8[%c0_3, %c0_4] : memref<1x1xf32, #tpu.memory_space<smem>>
    %10 = arith.addf %8, %9 : f32
    %11 = math.absf %3 : vector<2x16x16xf32>
    %12 = vector.broadcast %10 : f32 to vector<2x16x16xf32>
    %13 = arith.cmpf ogt, %11, %12 : vector<2x16x16xf32>
    %c0_5 = arith.constant 0 : index
    %c0_6 = arith.constant 0 : index
    %14 = memref.load %arg9[%c0_5, %c0_6] : memref<1x1xf32, #tpu.memory_space<smem>>
    %cst_7 = arith.constant 0.000000e+00 : f32
    %15 = vector.broadcast %14 : f32 to vector<2x16x16xf32>
    %16 = vector.broadcast %cst_7 : f32 to vector<2x16x16xf32>
    %17 = arith.select %13, %15, %16 : vector<2x16x16xi1>, vector<2x16x16xf32>
    %18 = arith.mulf %17, %3 : vector<2x16x16xf32>
    %c0_8 = arith.constant 0 : index
    %c0_9 = arith.constant 0 : index
    %19 = vector.load %arg2[%c0_8, %c0_9] : memref<2x64xf32, #tpu.memory_space<vmem>>, vector<2x64xf32>
    %c0_10 = arith.constant 0 : index
    %c0_11 = arith.constant 0 : index
    %20 = vector.load %arg3[%c0_10, %c0_11] : memref<64x16xf32, #tpu.memory_space<vmem>>, vector<64x16xf32>
    %cst_12 = arith.constant dense<0.000000e+00> : vector<2x16xf32>
    %21 = tpu.matmul %19, %20, %cst_12 {dimension_numbers = #tpu.dot_dimension_numbers<[1], [0], [0], [1], [0, 0, 1, 1], [], []>} : vector<2x64xf32>, vector<64x16xf32>, vector<2x16xf32> -> vector<2x16xf32>
    %c0_13 = arith.constant 0 : index
    %c0_14 = arith.constant 0 : index
    %22 = vector.load %arg4[%c0_13, %c0_14] : memref<1x16xf32, #tpu.memory_space<vmem>>, vector<1x16xf32>
    %23 = vector.broadcast %22 : vector<1x16xf32> to vector<2x16xf32>
    %24 = arith.addf %21, %23 : vector<2x16xf32>
    %c0_15 = arith.constant 0 : index
    %c0_16 = arith.constant 0 : index
    %25 = vector.load %arg7[%c0_15, %c0_16] : memref<16x16xf32, #tpu.memory_space<vmem>>, vector<16x16xf32>
    %26 = vector.shape_cast %25 : vector<16x16xf32> to vector<1x16x16xf32>
    %27 = vector.broadcast %26 : vector<1x16x16xf32> to vector<2x16x16xf32>
    %28 = arith.mulf %18, %27 : vector<2x16x16xf32>
    %cst_17 = arith.constant dense<0.000000e+00> : vector<2x16xf32>
    %29 = vector.multi_reduction <add>, %28, %cst_17 [1] : vector<2x16x16xf32> to vector<2x16xf32>
    %30 = arith.mulf %24, %29 : vector<2x16xf32>
    %c0_18 = arith.constant 0 : index
    %c0_19 = arith.constant 0 : index
    %31 = memref.load %arg10[%c0_18, %c0_19] : memref<1x1xf32, #tpu.memory_space<smem>>
    %32 = vector.broadcast %31 : f32 to vector<2x16xf32>
    %33 = arith.addf %30, %32 : vector<2x16xf32>
    %c0_20 = arith.constant 0 : index
    %c0_21 = arith.constant 0 : index
    %34 = vector.load %arg5[%c0_20, %c0_21] : memref<8x16xf32, #tpu.memory_space<vmem>>, vector<8x16xf32>
    %c0_22 = arith.constant 0 : index
    %c0_23 = arith.constant 0 : index
    %35 = vector.load %arg6[%c0_22, %c0_23] : memref<8x16xf32, #tpu.memory_space<vmem>>, vector<8x16xf32>
    %36 = vector.extract_strided_slice %18 {offsets = [0, 0, 0], sizes = [1, 16, 16], strides = [1, 1, 1]} : vector<2x16x16xf32> to vector<1x16x16xf32>
    %37 = vector.shape_cast %36 : vector<1x16x16xf32> to vector<16x16xf32>
    %cst_24 = arith.constant dense<0.000000e+00> : vector<8x16xf32>
    %38 = tpu.matmul %34, %37, %cst_24 {dimension_numbers = #tpu.dot_dimension_numbers<[1], [0], [0], [1], [0, 0, 1, 1], [], []>} : vector<8x16xf32>, vector<16x16xf32>, vector<8x16xf32> -> vector<8x16xf32>
    %39 = arith.addf %38, %35 : vector<8x16xf32>
    %40 = vector.extract_strided_slice %33 {offsets = [0, 0], sizes = [1, 16], strides = [1, 1]} : vector<2x16xf32> to vector<1x16xf32>
    %41 = vector.broadcast %40 : vector<1x16xf32> to vector<8x16xf32>
    %42 = arith.mulf %41, %39 : vector<8x16xf32>
    %43 = vector.extract_strided_slice %1 {offsets = [0, 0, 0], sizes = [1, 1, 16], strides = [1, 1, 1]} : vector<2x1x16xf32> to vector<1x1x16xf32>
    %44 = vector.shape_cast %43 : vector<1x1x16xf32> to vector<1x16xf32>
    %45 = vector.broadcast %44 : vector<1x16xf32> to vector<8x16xf32>
    %46 = arith.addf %42, %45 : vector<8x16xf32>
    %c0_25 = arith.constant 0 : index
    %c0_26 = arith.constant 0 : index
    %c0_27 = arith.constant 0 : index
    %47 = vector.load %arg11[%c0_25, %c0_26, %c0_27] : memref<2x8x16xf32, #tpu.memory_space<vmem>>, vector<1x8x16xf32>
    %48 = vector.shape_cast %47 : vector<1x8x16xf32> to vector<8x16xf32>
    %49 = vector.shape_cast %46 : vector<8x16xf32> to vector<1x8x16xf32>
    tpu.vector_store %arg11[%c0_25, %c0_26, %c0_27], %49 {strides = array<i32>} : memref<2x8x16xf32, #tpu.memory_space<vmem>>, vector<1x8x16xf32>,
    %50 = vector.extract_strided_slice %18 {offsets = [1, 0, 0], sizes = [1, 16, 16], strides = [1, 1, 1]} : vector<2x16x16xf32> to vector<1x16x16xf32>
    %51 = vector.shape_cast %50 : vector<1x16x16xf32> to vector<16x16xf32>
    %cst_28 = arith.constant dense<0.000000e+00> : vector<8x16xf32>
    %52 = tpu.matmul %34, %51, %cst_28 {dimension_numbers = #tpu.dot_dimension_numbers<[1], [0], [0], [1], [0, 0, 1, 1], [], []>} : vector<8x16xf32>, vector<16x16xf32>, vector<8x16xf32> -> vector<8x16xf32>
    %53 = arith.addf %52, %35 : vector<8x16xf32>
    %54 = vector.extract_strided_slice %33 {offsets = [1, 0], sizes = [1, 16], strides = [1, 1]} : vector<2x16xf32> to vector<1x16xf32>
    %55 = vector.broadcast %54 : vector<1x16xf32> to vector<8x16xf32>
    %56 = arith.mulf %55, %53 : vector<8x16xf32>
    %57 = vector.extract_strided_slice %1 {offsets = [1, 0, 0], sizes = [1, 1, 16], strides = [1, 1, 1]} : vector<2x1x16xf32> to vector<1x1x16xf32>
    %58 = vector.shape_cast %57 : vector<1x1x16xf32> to vector<1x16xf32>
    %59 = vector.broadcast %58 : vector<1x16xf32> to vector<8x16xf32>
    %60 = arith.addf %56, %59 : vector<8x16xf32>
    %c1 = arith.constant 1 : index
    %c0_29 = arith.constant 0 : index
    %c0_30 = arith.constant 0 : index
    %61 = vector.load %arg11[%c1, %c0_29, %c0_30] : memref<2x8x16xf32, #tpu.memory_space<vmem>>, vector<1x8x16xf32>
    %62 = vector.shape_cast %61 : vector<1x8x16xf32> to vector<8x16xf32>
    %63 = vector.shape_cast %60 : vector<8x16xf32> to vector<1x8x16xf32>
    tpu.vector_store %arg11[%c1, %c0_29, %c0_30], %63 {strides = array<i32>} : memref<2x8x16xf32, #tpu.memory_space<vmem>>, vector<1x8x16xf32>,
    return
  }
  func.func @transform_0(%arg0: i32) -> (i32, i32, i32) {
    %c0_i32 = arith.constant 0 : i32
    %c0_i32_0 = arith.constant 0 : i32
    %c0_i32_1 = arith.constant 0 : i32
    %c0_i32_2 = arith.constant 0 : i32
    return %c0_i32, %c0_i32_0, %c0_i32_1 : i32, i32, i32
  }
  func.func @transform_1(%arg0: i32) -> (i32, i32) {
    %c0_i32 = arith.constant 0 : i32
    %c0_i32_0 = arith.constant 0 : i32
    %c0_i32_1 = arith.constant 0 : i32
    return %c0_i32, %c0_i32_0 : i32, i32
  }
  func.func @transform_2(%arg0: i32) -> (i32, i32) {
    %c0_i32 = arith.constant 0 : i32
    %c0_i32_0 = arith.constant 0 : i32
    %c0_i32_1 = arith.constant 0 : i32
    return %c0_i32, %c0_i32_0 : i32, i32
  }
  func.func @transform_3(%arg0: i32) -> (i32, i32) {
    %c0_i32 = arith.constant 0 : i32
    %c0_i32_0 = arith.constant 0 : i32
    %c0_i32_1 = arith.constant 0 : i32
    return %c0_i32, %c0_i32_0 : i32, i32
  }
  func.func @transform_4(%arg0: i32) -> (i32, i32) {
    %c0_i32 = arith.constant 0 : i32
    %c0_i32_0 = arith.constant 0 : i32
    %c0_i32_1 = arith.constant 0 : i32
    return %c0_i32, %c0_i32_0 : i32, i32
  }
  func.func @transform_5(%arg0: i32) -> (i32, i32) {
    %c0_i32 = arith.constant 0 : i32
    %c0_i32_0 = arith.constant 0 : i32
    %c0_i32_1 = arith.constant 0 : i32
    return %c0_i32, %c0_i32_0 : i32, i32
  }
  func.func @transform_6(%arg0: i32) -> (i32, i32) {
    %c0_i32 = arith.constant 0 : i32
    %c0_i32_0 = arith.constant 0 : i32
    %c0_i32_1 = arith.constant 0 : i32
    return %c0_i32, %c0_i32_0 : i32, i32
  }
  func.func @transform_7(%arg0: i32) -> (i32, i32) {
    %c0_i32 = arith.constant 0 : i32
    %c0_i32_0 = arith.constant 0 : i32
    %c0_i32_1 = arith.constant 0 : i32
    return %c0_i32, %c0_i32_0 : i32, i32
  }
  func.func @transform_8(%arg0: i32) -> (i32, i32) {
    %c0_i32 = arith.constant 0 : i32
    %c0_i32_0 = arith.constant 0 : i32
    %c0_i32_1 = arith.constant 0 : i32
    return %c0_i32, %c0_i32_0 : i32, i32
  }
  func.func @transform_9(%arg0: i32) -> (i32, i32) {
    %c0_i32 = arith.constant 0 : i32
    %c0_i32_0 = arith.constant 0 : i32
    %c0_i32_1 = arith.constant 0 : i32
    return %c0_i32, %c0_i32_0 : i32, i32
  }
  func.func @transform_10(%arg0: i32) -> (i32, i32, i32) {
    %c0_i32 = arith.constant 0 : i32
    %c0_i32_0 = arith.constant 0 : i32
    %c0_i32_1 = arith.constant 0 : i32
    %c0_i32_2 = arith.constant 0 : i32
    return %c0_i32, %c0_i32_0, %c0_i32_1 : i32, i32, i32
  }
}

</mosaic_0001>

<llo_original>
// kernel: tpu_custom_call.1
$region0: #{tpu_custom_call.1}
  #allocation0 [shape = 'u32[]', space=smem, size = 0x4, offset = 0x4, fixed_abs, tag = 'smem constant byte address 0x4 - core index']
  #allocation1 [shape = 'u32[144,128]{1,0:T(1,128)}', space=vmem, size = 0x12000, scoped, tag = 'internal scratch']
  #allocation2 [shape = 'f32[1,1]{1,0:T(1,128)S(6)}', space=smem, size = 0x200, scoped, tag = 'scoped memory for tpu_custom_call.1']
  #allocation3 [shape = 'f32[1,1]{1,0:T(1,128)S(6)}', space=smem, size = 0x200, scoped, tag = 'scoped memory for tpu_custom_call.1']
  #allocation4 [shape = 'f32[1,1]{1,0:T(1,128)S(6)}', space=smem, size = 0x200, scoped, tag = 'scoped memory for tpu_custom_call.1']
  %s0 = inlined_call_operand.vmem [shape: f32[2,16,16], index: 0, kind: input, shape index: {}]
  %s1 = inlined_call_operand.vmem [shape: f32[2,64], index: 1, kind: input, shape index: {}]
  %s2 = inlined_call_operand.vmem [shape: f32[64,16], index: 2, kind: input, shape index: {}]
  %s3 = inlined_call_operand.vmem [shape: f32[1,16], index: 3, kind: input, shape index: {}]
  %s4 = inlined_call_operand.vmem [shape: f32[8,16], index: 4, kind: input, shape index: {}]
  %s5 = inlined_call_operand.vmem [shape: f32[8,16], index: 5, kind: input, shape index: {}]
  %s6 = inlined_call_operand.vmem [shape: f32[16,16], index: 6, kind: input, shape index: {}]
  %s7 = inlined_call_operand.<no memory space> [shape: f32[1,1], index: 7, kind: input, shape index: {}]
  %s8 = inlined_call_operand.<no memory space> [shape: f32[1,1], index: 8, kind: input, shape index: {}]
  %s9 = inlined_call_operand.<no memory space> [shape: f32[1,1], index: 9, kind: input, shape index: {}]
  %s10 = inlined_call_operand.hbm [shape: f32[2,8,16], index: 10, kind: output, shape index: {}]
  %s11 = sld [smem:[#allocation0]]
  $region50: #{tpu_custom_call.1} parent=0
    _
  %s13 = ssub.s32 1, %s11
  %s14 = scalar_select 0, %s13, %s11
  %15 = sst [smem:[#allocation2]] %s7
  %16 = sst [smem:[#allocation3]] %s8
  %17 = sst [smem:[#allocation4]] %s9
  $region1: #{tpu_custom_call.1} parent=0
    #allocation5 [shape = 'u8[8192]{0}', space=vmem, size = 0x2000, scoped, tag = 'output window, operand 0, single buffered']
    #allocation6 [shape = 's32[1]{0}', space=sflag, size = 0x4, scoped, tag = 'scoped memory for tpu_custom_call.1']
    %18 = vsyncpa [#allocation6], 0
    // Predicated region
    $region2: #{tpu_custom_call.1} parent=1 // pred_check
      _
    $region3: #{tpu_custom_call.1} parent=1 // pred_check_branch
      %20 = sbr.rel (0) target = $region5
    $region4: #{tpu_custom_call.1} parent=1 // pred_region
      _
    $region5: #{tpu_custom_call.1} parent=1 // pred_fallthru
      _
    // Predicated region
    $region6: #{tpu_custom_call.1} parent=1 // pred_check
      _
    $region7: #{tpu_custom_call.1} parent=1 // pred_check_branch
      %22 = sbr.rel (0) target = $region9
    $region8: #{tpu_custom_call.1} parent=1 // pred_region
      _
    $region9: #{tpu_custom_call.1} parent=1 // pred_fallthru
      _
    // Predicated region
    $region10: #{tpu_custom_call.1} parent=1 // pred_check
      _
    $region11: #{tpu_custom_call.1} parent=1 // pred_check_branch
      %24 = sbr.rel (0) target = $region13
    $region12: #{tpu_custom_call.1} parent=1 // pred_region
      _
    $region13: #{tpu_custom_call.1} parent=1 // pred_fallthru
      _
    // Predicated region
    $region14: #{tpu_custom_call.1} parent=1 // pred_check
      _
    $region15: #{tpu_custom_call.1} parent=1 // pred_check_branch
      %26 = sbr.rel (0) target = $region17
    $region16: #{tpu_custom_call.1} parent=1 // pred_region
      _
    $region17: #{tpu_custom_call.1} parent=1 // pred_fallthru
      _
    // Predicated region
    $region18: #{tpu_custom_call.1} parent=1 // pred_check
      _
    $region19: #{tpu_custom_call.1} parent=1 // pred_check_branch
      %28 = sbr.rel (0) target = $region21
    $region20: #{tpu_custom_call.1} parent=1 // pred_region
      _
    $region21: #{tpu_custom_call.1} parent=1 // pred_fallthru
      _
    // Predicated region
    $region22: #{tpu_custom_call.1} parent=1 // pred_check
      _
    $region23: #{tpu_custom_call.1} parent=1 // pred_check_branch
      %30 = sbr.rel (0) target = $region25
    $region24: #{tpu_custom_call.1} parent=1 // pred_region
      _
    $region25: #{tpu_custom_call.1} parent=1 // pred_fallthru
      _
    // Predicated region
    $region26: #{tpu_custom_call.1} parent=1 // pred_check
      _
    $region27: #{tpu_custom_call.1} parent=1 // pred_check_branch
      %32 = sbr.rel (0) target = $region29
    $region28: #{tpu_custom_call.1} parent=1 // pred_region
      _
    $region29: #{tpu_custom_call.1} parent=1 // pred_fallthru
      _
    // Predicated region
    $region30: #{tpu_custom_call.1} parent=1 // pred_check
      _
    $region31: #{tpu_custom_call.1} parent=1 // pred_check_branch
      %34 = sbr.rel (0) target = $region33
    $region32: #{tpu_custom_call.1} parent=1 // pred_region
      _
    $region33: #{tpu_custom_call.1} parent=1 // pred_fallthru
      _
    // Predicated region
    $region34: #{tpu_custom_call.1} parent=1 // pred_check
      _
    $region35: #{tpu_custom_call.1} parent=1 // pred_check_branch
      %36 = sbr.rel (0) target = $region37
    $region36: #{tpu_custom_call.1} parent=1 // pred_region
      _
    $region37: #{tpu_custom_call.1} parent=1 // pred_fallthru
      _
    // Predicated region
    $region38: #{tpu_custom_call.1} parent=1 // pred_check
      _
    $region39: #{tpu_custom_call.1} parent=1 // pred_check_branch
      %38 = sbr.rel (0) target = $region41
    $region40: #{tpu_custom_call.1} parent=1 // pred_region
      _
    $region41: #{tpu_custom_call.1} parent=1 // pred_fallthru
      _
    %v39 = vld [vmem:[%s0] sm:$0xff]
    %v40 = vld [vmem:[%s0 + $0x8] sm:$0xff]
    %v41 = vld [vmem:[%s0 + $0x10] sm:$0xff]
    %v42 = vld [vmem:[%s0 + $0x18] sm:$0xff]
    %v43 = vlaneseq
    %v44 = vshrl.u32 %v43, 7
    %v45 = vsub.s32 7, %v44
    %v46 = vrot.slane %v40, %v45
    %v47 = vlaneseq
    %v48 = vshrl.u32 %v47, 7
    %v49 = vsub.s32 7, %v48
    %v50 = vrot.slane %v42, %v49
    %v51 = vsub.f32 %v39, %v46
    %v52 = vsub.f32 %v40, %v46
    %v53 = vsub.f32 %v41, %v50
    %v54 = vsub.f32 %v42, %v50
    %vm55 = vcmask 130048
    %v56 = vsel %vm55, %v51, 0.0
    %v57 = vsel %vm55, %v52, 0.0
    %v58 = vadd.f32 %v56, %v57
    %v59 = vsel %vm55, %v53, 0.0
    %v60 = vadd.f32 %v58, %v59
    %v61 = vsel %vm55, %v54, 0.0
    %v62 = vadd.f32 %v60, %v61
    %63 = vadd.xlane.f32.xlu0 %v62
    %v64 = vpop.xlane.xlu0 %63
    %v65 = vrot.slane %v64, 4
    %v66 = vadd.f32 %v64, %v65
    %v67 = vrot.slane %v66, 2
    %v68 = vadd.f32 %v66, %v67
    %v69 = vrot.slane %v68, 1
    %v70 = vadd.f32 %v68, %v69
    %s71 = vtos %v70
    %v72 = vrcp.pop 512.0
    %s73 = vtos %v72
    %s74 = smul.f32 %s71, %s73
    %s75 = sld [smem:[#allocation2]]
    %s76 = sadd.f32 %s74, %s75
    %v77 = vand.u32 2147483647, %v51
    %v78 = vand.u32 2147483647, %v52
    %v79 = vand.u32 2147483647, %v53
    %v80 = vand.u32 2147483647, %v54
    %v81 = vstv %s76
    %vm82 = vcmp.gt.f32.partialorder %v77, %v81
    %vm83 = vcmp.gt.f32.partialorder %v78, %v81
    %vm84 = vcmp.gt.f32.partialorder %v79, %v81
    %vm85 = vcmp.gt.f32.partialorder %v80, %v81
    %s86 = sld [smem:[#allocation3]]
    %v87 = vstv %s86
    %v88 = vsel %vm82, %v87, 0.0
    %v89 = vsel %vm83, %v87, 0.0
    %v90 = vsel %vm84, %v87, 0.0
    %v91 = vsel %vm85, %v87, 0.0
    %v92 = vmul.f32 %v88, %v51
    %v93 = vmul.f32 %v89, %v52
    %v94 = vmul.f32 %v90, %v53
    %v95 = vmul.f32 %v91, %v54
    %v96 = vld [vmem:[%s1] sm:$0x3]
    %v97 = vld [vmem:[%s2] sm:$0xff]
    %v98 = vld [vmem:[%s2 + $0x8] sm:$0xff]
    %v99 = vld [vmem:[%s2 + $0x10] sm:$0xff]
    %v100 = vld [vmem:[%s2 + $0x18] sm:$0xff]
    %v101 = vld [vmem:[%s2 + $0x20] sm:$0xff]
    %v102 = vld [vmem:[%s2 + $0x28] sm:$0xff]
    %v103 = vld [vmem:[%s2 + $0x30] sm:$0xff]
    %v104 = vld [vmem:[%s2 + $0x38] sm:$0xff]
    %v105 = vld [vmem:[%s3] sm:$0x1]
    %v107 = vlaneseq
    %v108 = vshrl.u32 %v107, 7
    %v109 = vsub.s32 0, %v108
    %v110 = vrot.slane %v105, %v109
    %vm112 = vcmask 523264
    %v114 = vsel %vm112, %v96, 0
    %116 = vmatprep.subr.mxu0 0.0
    %117 = vmatpush1.msra.mxu0 0.0
    %118 = vmatprep.subr.mxu0 0.0
    %119 = vmatpush1.msra.mxu0 0.0
    %120 = vmatprep.subr.mxu0 0.0
    %121 = vmatpush1.msra.mxu0 0.0
    %122 = vmatprep.subr.mxu0 0.0
    %123 = vmatpush1.msra.mxu0 0.0
    %124 = vmatprep.subr.mxu0 0.0
    %125 = vmatpush1.msra.mxu0 0.0
    %126 = vmatprep.subr.mxu0 0.0
    %127 = vmatpush1.msra.mxu0 0.0
    %128 = vmatprep.subr.mxu0 0.0
    %129 = vmatpush1.msra.mxu0 0.0
    %130 = vmatprep.subr.mxu0 0.0
    %131 = vmatpush1.msra.mxu0 0.0
    %132 = vmatprep.subr.mxu0 0.0
    %133 = vmatpush1.msra.mxu0 %v104
    %134 = vmatprep.subr.mxu0 0.0
    %135 = vmatpush1.msra.mxu0 %v103
    %136 = vmatprep.subr.mxu0 0.0
    %137 = vmatpush1.msra.mxu0 %v102
    %138 = vmatprep.subr.mxu0 0.0
    %139 = vmatpush1.msra.mxu0 %v101
    %140 = vmatprep.subr.mxu0 0.0
    %141 = vmatpush1.msra.mxu0 %v100
    %142 = vmatprep.subr.mxu0 0.0
    %143 = vmatpush1.msra.mxu0 %v99
    %144 = vmatprep.subr.mxu0 0.0
    %145 = vmatpush1.msra.mxu0 %v98
    %146 = vmatprep.subr.mxu0 0.0
    %147 = vmatpush1.msra.mxu0 %v97
    %148 = vmatprep.subr.mxu0 0.0
    %149 = vmatpush2.msra.mxu0 0.0
    %150 = vmatprep.subr.mxu0 0.0
    %151 = vmatpush2.msra.mxu0 0.0
    %152 = vmatprep.subr.mxu0 0.0
    %153 = vmatpush2.msra.mxu0 0.0
    %154 = vmatprep.subr.mxu0 0.0
    %155 = vmatpush2.msra.mxu0 0.0
    %156 = vmatprep.subr.mxu0 0.0
    %157 = vmatpush2.msra.mxu0 0.0
    %158 = vmatprep.subr.mxu0 0.0
    %159 = vmatpush2.msra.mxu0 0.0
    %160 = vmatprep.subr.mxu0 0.0
    %161 = vmatpush2.msra.mxu0 0.0
    %162 = vmatprep.subr.mxu0 0.0
    %163 = vmatpush2.msra.mxu0 0.0
    %164 = vmatprep.subr.mxu0 0.0
    %165 = vmatpush2.msra.mxu0 0.0
    %166 = vmatprep.subr.mxu0 0.0
    %167 = vmatpush2.msra.mxu0 0.0
    %168 = vmatprep.subr.mxu0 0.0
    %169 = vmatpush2.msra.mxu0 0.0
    %170 = vmatprep.subr.mxu0 0.0
    %171 = vmatpush2.msra.mxu0 0.0
    %172 = vmatprep.subr.mxu0 0.0
    %173 = vmatpush2.msra.mxu0 0.0
    %174 = vmatprep.subr.mxu0 0.0
    %175 = vmatpush2.msra.mxu0 0.0
    %176 = vmatprep.subr.mxu0 0.0
    %177 = vmatpush2.msra.mxu0 0.0
    %178 = vmatprep.subr.mxu0 0.0
    %179 = vmatpush2.msra.mxu0 0.0
    %180 = vmatprep.mubr.f32.mxu0 0.0
    %181 = vmatmul.mubr.f32.gmra.mxu0 %v114
    %v182 = vpop.f32.mrf.mxu0
    %v183 = vadd.f32 %v110, %v182
    %v184 = vpop.f32.mrf.mxu0
    %185 = vdwg.mxu0
    %v186 = vld [vmem:[%s6] sm:$0xff]
    %v187 = vld [vmem:[%s6 + $0x8] sm:$0xff]
    %v188 = vmul.f32 %v92, %v186
    %v189 = vmul.f32 %v93, %v187
    %v190 = vmul.f32 %v94, %v186
    %v191 = vmul.f32 %v95, %v187
    %v192 = vsel %vm55, %v188, 0.0
    %v193 = vsel %vm55, %v189, 0.0
    %v194 = vadd.f32 %v192, %v193
    %v195 = vrot.slane %v194, 4
    %v196 = vadd.f32 %v194, %v195
    %v197 = vrot.slane %v196, 2
    %v198 = vadd.f32 %v196, %v197
    %v199 = vrot.slane %v198, 1
    %v200 = vadd.f32 %v198, %v199
    %v201 = vsel %vm55, %v190, 0.0
    %v202 = vsel %vm55, %v191, 0.0
    %v203 = vadd.f32 %v201, %v202
    %v204 = vrot.slane %v203, 4
    %v205 = vadd.f32 %v203, %v204
    %v206 = vrot.slane %v205, 2
    %v207 = vadd.f32 %v205, %v206
    %v208 = vrot.slane %v207, 1
    %v209 = vadd.f32 %v207, %v208
    %vm212 = vcmask 1041409
    %v213 = vsel %vm212, %v209, %v200
    %v215 = vmul.f32 %v183, %v213
    %s216 = sld [smem:[#allocation4]]
    %v217 = vstv %s216
    %v218 = vadd.f32 %v215, %v217
    %v219 = vld [vmem:[%s4] sm:$0xff]
    %v220 = vld [vmem:[%s5] sm:$0xff]
    %v222 = vsel %vm55, %v219, 0
    %224 = vmatprep.subr.mxu0 0.0
    %225 = vmatpush1.msra.mxu0 0.0
    %226 = vmatprep.subr.mxu0 0.0
    %227 = vmatpush1.msra.mxu0 0.0
    %228 = vmatprep.subr.mxu0 0.0
    %229 = vmatpush1.msra.mxu0 0.0
    %230 = vmatprep.subr.mxu0 0.0
    %231 = vmatpush1.msra.mxu0 0.0
    %232 = vmatprep.subr.mxu0 0.0
    %233 = vmatpush1.msra.mxu0 0.0
    %234 = vmatprep.subr.mxu0 0.0
    %235 = vmatpush1.msra.mxu0 0.0
    %236 = vmatprep.subr.mxu0 0.0
    %237 = vmatpush1.msra.mxu0 0.0
    %238 = vmatprep.subr.mxu0 0.0
    %239 = vmatpush1.msra.mxu0 0.0
    %240 = vmatprep.subr.mxu0 0.0
    %241 = vmatpush1.msra.mxu0 0.0
    %242 = vmatprep.subr.mxu0 0.0
    %243 = vmatpush1.msra.mxu0 0.0
    %244 = vmatprep.subr.mxu0 0.0
    %245 = vmatpush1.msra.mxu0 0.0
    %246 = vmatprep.subr.mxu0 0.0
    %247 = vmatpush1.msra.mxu0 0.0
    %248 = vmatprep.subr.mxu0 0.0
    %249 = vmatpush1.msra.mxu0 0.0
    %250 = vmatprep.subr.mxu0 0.0
    %251 = vmatpush1.msra.mxu0 0.0
    %252 = vmatprep.subr.mxu0 0.0
    %253 = vmatpush1.msra.mxu0 %v93
    %254 = vmatprep.subr.mxu0 0.0
    %255 = vmatpush1.msra.mxu0 %v92
    %256 = vmatprep.subr.mxu0 0.0
    %257 = vmatpush2.msra.mxu0 0.0
    %258 = vmatprep.subr.mxu0 0.0
    %259 = vmatpush2.msra.mxu0 0.0
    %260 = vmatprep.subr.mxu0 0.0
    %261 = vmatpush2.msra.mxu0 0.0
    %262 = vmatprep.subr.mxu0 0.0
    %263 = vmatpush2.msra.mxu0 0.0
    %264 = vmatprep.subr.mxu0 0.0
    %265 = vmatpush2.msra.mxu0 0.0
    %266 = vmatprep.subr.mxu0 0.0
    %267 = vmatpush2.msra.mxu0 0.0
    %268 = vmatprep.subr.mxu0 0.0
    %269 = vmatpush2.msra.mxu0 0.0
    %270 = vmatprep.subr.mxu0 0.0
    %271 = vmatpush2.msra.mxu0 0.0
    %272 = vmatprep.subr.mxu0 0.0
    %273 = vmatpush2.msra.mxu0 0.0
    %274 = vmatprep.subr.mxu0 0.0
    %275 = vmatpush2.msra.mxu0 0.0
    %276 = vmatprep.subr.mxu0 0.0
    %277 = vmatpush2.msra.mxu0 0.0
    %278 = vmatprep.subr.mxu0 0.0
    %279 = vmatpush2.msra.mxu0 0.0
    %280 = vmatprep.subr.mxu0 0.0
    %281 = vmatpush2.msra.mxu0 0.0
    %282 = vmatprep.subr.mxu0 0.0
    %283 = vmatpush2.msra.mxu0 0.0
    %284 = vmatprep.subr.mxu0 0.0
    %285 = vmatpush2.msra.mxu0 0.0
    %286 = vmatprep.subr.mxu0 0.0
    %287 = vmatpush2.msra.mxu0 0.0
    %288 = vmatprep.mubr.f32.mxu0 0.0
    %289 = vmatmul.mubr.f32.gmra.mxu0 %v222
    %v290 = vpop.f32.mrf.mxu0
    %v291 = vadd.f32 %v220, %v290
    %v292 = vpop.f32.mrf.mxu0
    %293 = vdwg.mxu0
    %v294 = vlaneseq
    %v295 = vshrl.u32 %v294, 7
    %v296 = vsub.s32 0, %v295
    %v297 = vrot.slane %v218, %v296
    %v298 = vmul.f32 %v297, %v291
    %v299 = vadd.f32 %v298, %v46
    %300 = vst.msk [vmem:[#allocation5] sm:$0xff] %vm55, %v299
    %301 = vmatprep.subr.mxu0 0.0
    %302 = vmatpush1.msra.mxu0 0.0
    %303 = vmatprep.subr.mxu0 0.0
    %304 = vmatpush1.msra.mxu0 0.0
    %305 = vmatprep.subr.mxu0 0.0
    %306 = vmatpush1.msra.mxu0 0.0
    %307 = vmatprep.subr.mxu0 0.0
    %308 = vmatpush1.msra.mxu0 0.0
    %309 = vmatprep.subr.mxu0 0.0
    %310 = vmatpush1.msra.mxu0 0.0
    %311 = vmatprep.subr.mxu0 0.0
    %312 = vmatpush1.msra.mxu0 0.0
    %313 = vmatprep.subr.mxu0 0.0
    %314 = vmatpush1.msra.mxu0 0.0
    %315 = vmatprep.subr.mxu0 0.0
    %316 = vmatpush1.msra.mxu0 0.0
    %317 = vmatprep.subr.mxu0 0.0
    %318 = vmatpush1.msra.mxu0 0.0
    %319 = vmatprep.subr.mxu0 0.0
    %320 = vmatpush1.msra.mxu0 0.0
    %321 = vmatprep.subr.mxu0 0.0
    %322 = vmatpush1.msra.mxu0 0.0
    %323 = vmatprep.subr.mxu0 0.0
    %324 = vmatpush1.msra.mxu0 0.0
    %325 = vmatprep.subr.mxu0 0.0
    %326 = vmatpush1.msra.mxu0 0.0
    %327 = vmatprep.subr.mxu0 0.0
    %328 = vmatpush1.msra.mxu0 0.0
    %329 = vmatprep.subr.mxu0 0.0
    %330 = vmatpush1.msra.mxu0 %v95
    %331 = vmatprep.subr.mxu0 0.0
    %332 = vmatpush1.msra.mxu0 %v94
    %333 = vmatprep.subr.mxu0 0.0
    %334 = vmatpush2.msra.mxu0 0.0
    %335 = vmatprep.subr.mxu0 0.0
    %336 = vmatpush2.msra.mxu0 0.0
    %337 = vmatprep.subr.mxu0 0.0
    %338 = vmatpush2.msra.mxu0 0.0
    %339 = vmatprep.subr.mxu0 0.0
    %340 = vmatpush2.msra.mxu0 0.0
    %341 = vmatprep.subr.mxu0 0.0
    %342 = vmatpush2.msra.mxu0 0.0
    %343 = vmatprep.subr.mxu0 0.0
    %344 = vmatpush2.msra.mxu0 0.0
    %345 = vmatprep.subr.mxu0 0.0
    %346 = vmatpush2.msra.mxu0 0.0
    %347 = vmatprep.subr.mxu0 0.0
    %348 = vmatpush2.msra.mxu0 0.0
    %349 = vmatprep.subr.mxu0 0.0
    %350 = vmatpush2.msra.mxu0 0.0
    %351 = vmatprep.subr.mxu0 0.0
    %352 = vmatpush2.msra.mxu0 0.0
    %353 = vmatprep.subr.mxu0 0.0
    %354 = vmatpush2.msra.mxu0 0.0
    %355 = vmatprep.subr.mxu0 0.0
    %356 = vmatpush2.msra.mxu0 0.0
    %357 = vmatprep.subr.mxu0 0.0
    %358 = vmatpush2.msra.mxu0 0.0
    %359 = vmatprep.subr.mxu0 0.0
    %360 = vmatpush2.msra.mxu0 0.0
    %361 = vmatprep.subr.mxu0 0.0
    %362 = vmatpush2.msra.mxu0 0.0
    %363 = vmatprep.subr.mxu0 0.0
    %364 = vmatpush2.msra.mxu0 0.0
    %365 = vmatprep.mubr.f32.mxu0 0.0
    %366 = vmatmul.mubr.f32.gmra.mxu0 %v222
    %v367 = vpop.f32.mrf.mxu0
    %v368 = vadd.f32 %v220, %v367
    %v369 = vpop.f32.mrf.mxu0
    %370 = vdwg.mxu0
    %v371 = vlaneseq
    %v372 = vshrl.u32 %v371, 7
    %v373 = vsub.s32 1, %v372
    %v374 = vrot.slane %v218, %v373
    %v375 = vmul.f32 %v374, %v368
    %v376 = vadd.f32 %v375, %v50
    %s377 = scalar_lea.vmem [#allocation5], 8
    %378 = vst.msk [vmem:[%s377] sm:$0xff] %vm55, %v376
    // Predicated region
    $region42: #{tpu_custom_call.1} parent=1 // pred_check
      _
    $region43: #{tpu_custom_call.1} parent=1 // pred_check_branch
      %380 = sbr.rel (0) target = $region45
    $region44: #{tpu_custom_call.1} parent=1 // pred_region
      %s382 = ssub.s32 256, 256
      %383 = vsyncadd [#allocation6], %s382
      %s384 = sshll.u32 [#allocation5], 4
      %s385 = int_to_ptr.vmem [resolvable:$true] %s384
      %390 = dma.vmem_to_hbm [thread:$0]  %s385, 256, %s10, [#allocation6], 128, 128, 8
    $region45: #{tpu_custom_call.1} parent=1 // pred_fallthru
      _
    // Predicated region
    $region46: #{tpu_custom_call.1} parent=1 // pred_check
      _
    $region47: #{tpu_custom_call.1} parent=1 // pred_check_branch
      %392 = sbr.rel (0) target = $region49
    $region48: #{tpu_custom_call.1} parent=1 // pred_region
      %393 = dma.done [#allocation6], 256
    $region49: #{tpu_custom_call.1} parent=1 // pred_fallthru
      _
    %394 = vsyncpa [#allocation6], 1

</llo_original>
